<compile_context>
chip_gen: v7x
topology: tpu7x:2x2x1
jax: 0.10.0
libtpu: 0.0.40
codegen_flags: <defaults>
</compile_context>

<pallas_src>
import functools

import jax
import jax.numpy as jnp
from jax.experimental import pallas as pl
from jax.experimental.pallas import tpu as pltpu


def _conv_bn_relu_kernel(x_ref, w_ref, scale_ref, shift_ref, o_ref, *,
                         kh_size, kw_size, tile_h, w_out):
    """One (batch, H-tile) per grid step.

    x_ref:     (1, Hp, Wp, Cin)        bf16 padded image (resident across t)
    w_ref:     (Cout, KH*KW*Cin)       bf16 im2col-folded weights
    scale_ref: (Cout, 1)               f32 folded BN scale
    shift_ref: (Cout, 1)               f32 folded BN shift
    o_ref:     (1, Cout, TH*Wout)      f32 output tile (lane-dense last dim)
    """
    t = pl.program_id(1)
    c_in = x_ref.shape[3]

    # Input rows feeding output rows [t*TH, (t+1)*TH): dynamic leading-dim
    # slice of the resident padded image (no sublane shuffle).
    row0 = pl.multiple_of(t * tile_h, tile_h)
    xt = x_ref[0, pl.ds(row0, tile_h + kh_size - 1), :, :]   # (TH+KH-1, Wp, Cin)

    # im2col so the contraction is a single K = KH*KW*Cin axis:
    #   - KW width-shifted views computed once, shared by all kh,
    #   - KH height shifts are leading-dim slices (free),
    #   - K lane order is (kh, kw, cin), matching w_ref.
    # TODO(synk): the kw shifts could use pltpu.roll (XLU) to overlap fully
    #             with the MXU instead of sublane-shifted slices.
    x_w = jnp.concatenate(
        [xt[:, kw:kw + w_out, :] for kw in range(kw_size)], axis=-1)
    patch = jnp.concatenate(
        [x_w[kh:kh + tile_h] for kh in range(kh_size)], axis=-1)
    patch = patch.reshape(tile_h * w_out, kh_size * kw_size * c_in)

    # Single MXU matmul, bf16 x bf16 -> f32:
    #   (Cout, K) @ (TH*Wout, K)^T -> (Cout, TH*Wout), channel-major output.
    acc = jax.lax.dot_general(
        w_ref[...], patch,
        dimension_numbers=(((1,), (1,)), ((), ())),
        preferred_element_type=jnp.float32)

    # Folded BatchNorm (inference) + ReLU epilogue in f32; lane-dense store.
    y = acc * scale_ref[...] + shift_ref[...]
    o_ref[0, :, :] = jnp.maximum(y, 0.0).astype(o_ref.dtype)


def _pick_tile_h(h_out, w_out):
    """Smallest H tile dividing Hout whose flattened row (TH*Wout) is a
    multiple of 128 lanes; fall back to the full height."""
    cands = [t for t in range(1, h_out + 1)
             if h_out % t == 0 and (t * w_out) % 128 == 0]
    if not cands:
        return h_out
    for t in cands:
        if t >= 8:
            return t
    return cands[0]


@functools.partial(jax.jit, static_argnames=("padding",))
def basic_conv2d(x_nchw, w_oihw, gamma, beta, running_mean, running_var,
                 *, padding=1, eps=1e-3):
    """BasicConv2d forward: conv(bias=False) -> BN(eps=1e-3, eval) -> ReLU.

    x_nchw: (N, Cin, H, W), w_oihw: (Cout, Cin, KH, KW). Stride = 1.
    Returns NCHW output, matching the PyTorch module.
    """
    N, Cin, H, W = x_nchw.shape
    Cout, _, KH, KW = w_oihw.shape
    Hout = H + 2 * padding - (KH - 1)
    Wout = W + 2 * padding - (KW - 1)
    Hp = H + 2 * padding
    Wp = W + 2 * padding
    K = KH * KW * Cin

    TH = _pick_tile_h(Hout, Wout)
    nH = Hout // TH

    # ---- glue (fused by XLA into one pass): NCHW -> NHWC, zero-pad, bf16 ----
    # TODO(synk): accept NHWC at the API boundary to drop this transpose too.
    x_nhwc = jnp.transpose(x_nchw, (0, 2, 3, 1))
    x_pad = jnp.pad(
        x_nhwc, ((0, 0), (padding, padding), (padding, padding), (0, 0)))
    x_pad = x_pad.astype(jnp.bfloat16)

    # im2col-folded weights: (Cout, KH*KW*Cin), K ordered (kh, kw, cin), bf16.
    w2 = jnp.transpose(w_oihw, (0, 2, 3, 1)).reshape(Cout, K).astype(jnp.bfloat16)

    # Folded BatchNorm (inference) scale / shift, kept in f32.
    scale = (gamma / jnp.sqrt(running_var + eps)).astype(jnp.float32)
    shift = (beta - running_mean * scale).astype(jnp.float32)
    scale2 = scale.reshape(Cout, 1)
    shift2 = shift.reshape(Cout, 1)

    kernel = functools.partial(
        _conv_bn_relu_kernel, kh_size=KH, kw_size=KW, tile_h=TH, w_out=Wout)

    flops = 2 * N * Hout * Wout * Cout * K
    bytes_accessed = (N * Hp * Wp * Cin * 2 + Cout * K * 2 + 2 * Cout * 4
                      + N * Cout * Hout * Wout * 4)

    out_flat = pl.pallas_call(
        kernel,
        out_shape=jax.ShapeDtypeStruct((N, Cout, Hout * Wout), jnp.float32),
        grid_spec=pltpu.PrefetchScalarGridSpec(
            num_scalar_prefetch=0,
            grid=(N, nH),
            in_specs=[
                # Whole padded image per batch element; index_map ignores t so
                # the block stays resident in VMEM across the H-tile axis.
                pl.BlockSpec((1, Hp, Wp, Cin), lambda b, t: (b, 0, 0, 0)),
                pl.BlockSpec((Cout, K), lambda b, t: (0, 0)),
                pl.BlockSpec((Cout, 1), lambda b, t: (0, 0)),
                pl.BlockSpec((Cout, 1), lambda b, t: (0, 0)),
            ],
            # Channel-major output with H*W on the lane axis: block last dim is
            # TH*Wout (multiple of 128 here) -> unmasked lane-dense stores, and
            # the NCHW reshape below is free.
            out_specs=pl.BlockSpec((1, Cout, TH * Wout), lambda b, t: (b, 0, t)),
        ),
        compiler_params=pltpu.CompilerParams(
            dimension_semantics=("parallel", "arbitrary"),
            vmem_limit_bytes=32 * 1024 * 1024),
        cost_estimate=pl.CostEstimate(
            flops=flops, transcendentals=0, bytes_accessed=bytes_accessed),
    )(x_pad, w2, scale2, shift2)

    # Free reshape: the flat layout is already NCHW-ordered in memory.
    return out_flat.reshape(N, Cout, Hout, Wout)


def _reference(x_nchw, w_oihw, gamma, beta, mean, var, *, padding=1, eps=1e-3):
    """Pure-JAX reference (for a sanity check)."""
    y = jax.lax.conv_general_dilated(
        x_nchw.astype(jnp.float32), w_oihw.astype(jnp.float32),
        window_strides=(1, 1), padding=[(padding, padding), (padding, padding)],
        dimension_numbers=("NCHW", "OIHW", "NCHW"))
    scale = gamma / jnp.sqrt(var + eps)
    shift = beta - mean * scale
    y = y * scale[None, :, None, None] + shift[None, :, None, None]
    return jnp.maximum(y, 0.0)


if __name__ == "__main__":
    key = jax.random.PRNGKey(0)
    k_x, k_w, k_g, k_b, k_m, k_v = jax.random.split(key, 6)

    # BasicConv2d(in_channels=4, out_channels=8, kernel_size=3, padding=1)
    N, Cin, H, W = 2, 4, 16, 16
    Cout, KH, KW = 8, 3, 3

    x = jax.random.normal(k_x, (N, Cin, H, W), jnp.float32)
    w = jax.random.normal(k_w, (Cout, Cin, KH, KW), jnp.float32) * 0.1
    # Pre-round conv operands to bf16-representable values so the kernel (bf16
    # MXU operands, f32 accumulation) and the f32 reference see identical
    # inputs; any remaining difference is accumulation order only.
    x = x.astype(jnp.bfloat16).astype(jnp.float32)
    w = w.astype(jnp.bfloat16).astype(jnp.float32)

    gamma = 1.0 + 0.1 * jax.random.normal(k_g, (Cout,), jnp.float32)
    beta = 0.1 * jax.random.normal(k_b, (Cout,), jnp.float32)
    running_mean = 0.1 * jax.random.normal(k_m, (Cout,), jnp.float32)
    running_var = jnp.abs(jax.random.normal(k_v, (Cout,), jnp.float32)) + 0.5

    out = basic_conv2d(x, w, gamma, beta, running_mean, running_var, padding=1)
    out = jax.block_until_ready(out)

    ref = _reference(x, w, gamma, beta, running_mean, running_var, padding=1)
    assert out.shape == (N, Cout, H, W), out.shape
    err = float(jnp.max(jnp.abs(out - ref)))
    assert err < 2e-3, err

    print("KERNEL_OK")
</pallas_src>

<mosaic_0001>
module attributes {stable_mosaic.version = 11 : i64} {
  func.func @_conv_bn_relu_kernel(%arg0: i32, %arg1: i32, %arg2: memref<1x18x18x4xbf16, #tpu.memory_space<vmem>>, %arg3: memref<8x36xbf16, #tpu.memory_space<vmem>>, %arg4: memref<8x1xf32, #tpu.memory_space<vmem>>, %arg5: memref<8x1xf32, #tpu.memory_space<vmem>>, %arg6: memref<1x8x128xf32, #tpu.memory_space<vmem>>) attributes {dimension_semantics = [#tpu.dimension_semantics<parallel>, #tpu.dimension_semantics<arbitrary>], iteration_bounds = array<i64: 2, 2>, scalar_prefetch = 0 : i64, scratch_operands = 0 : i64, tpu.core_type = #tpu.core_type<tc>, window_params = [{transform_indices = @transform_0, window_bounds = array<i64: 1, 18, 18, 4>}, {pipeline_mode = #tpu.pipeline_mode<synchronous>, transform_indices = @transform_1, window_bounds = array<i64: 8, 36>}, {pipeline_mode = #tpu.pipeline_mode<synchronous>, transform_indices = @transform_2, window_bounds = array<i64: 8, 1>}, {pipeline_mode = #tpu.pipeline_mode<synchronous>, transform_indices = @transform_3, window_bounds = array<i64: 8, 1>}, {transform_indices = @transform_4, window_bounds = array<i64: 1, 8, 128>}]} {
    %c8_i32 = arith.constant 8 : i32
    %0 = arith.muli %arg1, %c8_i32 : i32
    %1 = tpu.assume_multiple %0, 8 : i32
    %c0 = arith.constant 0 : index
    %2 = arith.index_cast %1 : i32 to index
    %c0_0 = arith.constant 0 : index
    %c0_1 = arith.constant 0 : index
    %3 = vector.load %arg2[%c0, %2, %c0_0, %c0_1] : memref<1x18x18x4xbf16, #tpu.memory_space<vmem>>, vector<1x10x18x4xbf16>
    %4 = vector.shape_cast %3 : vector<1x10x18x4xbf16> to vector<10x18x4xbf16>
    %5 = vector.extract_strided_slice %4 {offsets = [0, 0, 0], sizes = [10, 16, 4], strides = [1, 1, 1]} : vector<10x18x4xbf16> to vector<10x16x4xbf16>
    %6 = vector.extract_strided_slice %4 {offsets = [0, 1, 0], sizes = [10, 16, 4], strides = [1, 1, 1]} : vector<10x18x4xbf16> to vector<10x16x4xbf16>
    %7 = vector.extract_strided_slice %4 {offsets = [0, 2, 0], sizes = [10, 16, 4], strides = [1, 1, 1]} : vector<10x18x4xbf16> to vector<10x16x4xbf16>
    %8 = tpu.concatenate %5, %6, %7 in 2 : vector<10x16x4xbf16>, vector<10x16x4xbf16>, vector<10x16x4xbf16> -> vector<10x16x12xbf16>
    %9 = vector.extract_strided_slice %8 {offsets = [0, 0, 0], sizes = [8, 16, 12], strides = [1, 1, 1]} : vector<10x16x12xbf16> to vector<8x16x12xbf16>
    %10 = vector.extract_strided_slice %8 {offsets = [1, 0, 0], sizes = [8, 16, 12], strides = [1, 1, 1]} : vector<10x16x12xbf16> to vector<8x16x12xbf16>
    %11 = vector.extract_strided_slice %8 {offsets = [2, 0, 0], sizes = [8, 16, 12], strides = [1, 1, 1]} : vector<10x16x12xbf16> to vector<8x16x12xbf16>
    %12 = tpu.concatenate %9, %10, %11 in 2 : vector<8x16x12xbf16>, vector<8x16x12xbf16>, vector<8x16x12xbf16> -> vector<8x16x36xbf16>
    %13 = vector.shape_cast %12 : vector<8x16x36xbf16> to vector<128x36xbf16>
    %c0_2 = arith.constant 0 : index
    %c0_3 = arith.constant 0 : index
    %14 = vector.load %arg3[%c0_2, %c0_3] : memref<8x36xbf16, #tpu.memory_space<vmem>>, vector<8x36xbf16>
    %cst = arith.constant dense<0.000000e+00> : vector<8x128xf32>
    %15 = tpu.matmul %14, %13, %cst {dimension_numbers = #tpu.dot_dimension_numbers<[1], [1], [0], [0], [0, 0, 1, 0], [], []>} : vector<8x36xbf16>, vector<128x36xbf16>, vector<8x128xf32> -> vector<8x128xf32>
    %c0_4 = arith.constant 0 : index
    %c0_5 = arith.constant 0 : index
    %16 = vector.load %arg4[%c0_4, %c0_5] : memref<8x1xf32, #tpu.memory_space<vmem>>, vector<8x1xf32>
    %17 = vector.broadcast %16 : vector<8x1xf32> to vector<8x128xf32>
    %18 = arith.mulf %15, %17 : vector<8x128xf32>
    %c0_6 = arith.constant 0 : index
    %c0_7 = arith.constant 0 : index
    %19 = vector.load %arg5[%c0_6, %c0_7] : memref<8x1xf32, #tpu.memory_space<vmem>>, vector<8x1xf32>
    %20 = vector.broadcast %19 : vector<8x1xf32> to vector<8x128xf32>
    %21 = arith.addf %18, %20 : vector<8x128xf32>
    %cst_8 = arith.constant 0.000000e+00 : f32
    %22 = vector.broadcast %cst_8 : f32 to vector<8x128xf32>
    %23 = arith.maximumf %21, %22 : vector<8x128xf32>
    %c0_9 = arith.constant 0 : index
    %c0_10 = arith.constant 0 : index
    %c0_11 = arith.constant 0 : index
    %24 = vector.load %arg6[%c0_9, %c0_10, %c0_11] : memref<1x8x128xf32, #tpu.memory_space<vmem>>, vector<1x8x128xf32>
    %25 = vector.shape_cast %24 : vector<1x8x128xf32> to vector<8x128xf32>
    %26 = vector.shape_cast %23 : vector<8x128xf32> to vector<1x8x128xf32>
    tpu.vector_store %arg6[%c0_9, %c0_10, %c0_11], %26 {strides = array<i32>} : memref<1x8x128xf32, #tpu.memory_space<vmem>>, vector<1x8x128xf32>,
    return
  }
  func.func @transform_0(%arg0: i32, %arg1: i32) -> (i32, i32, i32, i32) {
    %c0_i32 = arith.constant 0 : i32
    %c0_i32_0 = arith.constant 0 : i32
    %c0_i32_1 = arith.constant 0 : i32
    %c0_i32_2 = arith.constant 0 : i32
    return %arg0, %c0_i32, %c0_i32_0, %c0_i32_1 : i32, i32, i32, i32
  }
  func.func @transform_1(%arg0: i32, %arg1: i32) -> (i32, i32) {
    %c0_i32 = arith.constant 0 : i32
    %c0_i32_0 = arith.constant 0 : i32
    %c0_i32_1 = arith.constant 0 : i32
    return %c0_i32, %c0_i32_0 : i32, i32
  }
  func.func @transform_2(%arg0: i32, %arg1: i32) -> (i32, i32) {
    %c0_i32 = arith.constant 0 : i32
    %c0_i32_0 = arith.constant 0 : i32
    %c0_i32_1 = arith.constant 0 : i32
    return %c0_i32, %c0_i32_0 : i32, i32
  }
  func.func @transform_3(%arg0: i32, %arg1: i32) -> (i32, i32) {
    %c0_i32 = arith.constant 0 : i32
    %c0_i32_0 = arith.constant 0 : i32
    %c0_i32_1 = arith.constant 0 : i32
    return %c0_i32, %c0_i32_0 : i32, i32
  }
  func.func @transform_4(%arg0: i32, %arg1: i32) -> (i32, i32, i32) {
    %c0_i32 = arith.constant 0 : i32
    %c0_i32_0 = arith.constant 0 : i32
    return %arg0, %c0_i32, %arg1 : i32, i32, i32
  }
}

</mosaic_0001>

<llo_original>
// kernel: basic_conv2d.1
$region0: #{basic_conv2d.1}
  #allocation0 [shape = 'u32[]', space=smem, size = 0x4, offset = 0x4, fixed_abs, tag = 'smem constant byte address 0x4 - core index']
  #allocation1 [shape = 'u32[144,128]{1,0:T(1,128)}', space=vmem, size = 0x12000, scoped, tag = 'internal scratch']
  %s0 = inlined_call_operand.vmem [shape: bf16[2,18,18,4], index: 0, kind: input, shape index: {}]
  %s1 = inlined_call_operand.vmem [shape: bf16[8,36], index: 1, kind: input, shape index: {}]
  %s2 = inlined_call_operand.vmem [shape: f32[8,1], index: 2, kind: input, shape index: {}]
  %s3 = inlined_call_operand.vmem [shape: f32[8,1], index: 3, kind: input, shape index: {}]
  %s4 = inlined_call_operand.vmem [shape: f32[2,8,256], index: 4, kind: output, shape index: {}]
  %s5 = sld [smem:[#allocation0]]
  $region49: #{basic_conv2d.1} parent=0
    _
  %s7 = ssub.s32 1, %s5
  %s8 = scalar_select 0, %s7, %s5
  loop: start=0, step=1, limit=6
  $region2: #{basic_conv2d.1} parent=0 // loop_pre_header
    _
  $region3: #{basic_conv2d.1} parent=0 // loop_header
    %s10 = sphi 0, %s14
    %p11 = scmp.ge.s32.totalorder %s10, 6
    %s17 = sphi 0, %s29
    %s18 = sphi 0, %s25
    %s19 = sphi 0, %s17
    %s20 = sphi 0, %s18
    %s21 = sphi 0, %s19
    %s22 = sphi 0, %s20
    %s32 = sphi 0, %s34
    %s35 = sphi 0, %s32
    %s36 = sphi 0, %s35
    %s52 = sphi 0, %s36
    %s56 = sphi 0, %s56
    %s58 = sphi 0, %s56
    %s59 = sphi 0, %s58
    %s73 = sphi 0, %s59
    %s77 = sphi 0, %s77
    %s79 = sphi 0, %s77
    %s80 = sphi 0, %s79
    %s94 = sphi 0, %s80
    %s98 = sphi 0, %s98
    %s100 = sphi 0, %s98
    %s101 = sphi 0, %s100
    %s115 = sphi 0, %s101
    %s123 = sphi 0, %s125
    %s126 = sphi 0, %s123
    %s127 = sphi 0, %s126
    %s143 = sphi 0, %s127
  $region4: #{basic_conv2d.1} parent=0 // loop_header_branch
    %13 = sbr.rel (%p11) target = $region8
  $region5: #{basic_conv2d.1} parent=0 // loop_body
    %s15 = ssub.s32 %s10, 1
    %s16 = ssub.s32 %s10, 2
    %s23 = sadd.s32 1, %s18
    %p24 = scmp.ge.s32.totalorder %s23, 2
    %s25 = scalar_select %p24, 0, %s23
    %s26 = sadd.s32 1, %s17
    %s27 = scalar_select %p24, %s26, %s17
    %p28 = scmp.ge.s32.totalorder %s27, 2
    %s29 = scalar_select %p28, 0, %s27
    %s30 = ssub.s32 %s17, %s29
    %p31 = scmp.eq.s32.totalorder %s30, 0
    %s33 = sadd.s32 %s32, 1
    %s34 = scalar_select %p31, %s32, %s33
    %p37 = pneg %p31
    %p38 = scmp.eq.s32.totalorder %s10, 3
    %p39 = por %p37, %p38
    %p40 = scmp.ne.s32.totalorder %s32, %s35
    %p41 = scmp.eq.s32.totalorder %s10, 0
    %p42 = por %p40, %p41
    %p43 = scmp.ne.s32.totalorder %s32, %s35
    %p44 = scmp.eq.s32.totalorder %s15, 3
    %p45 = por %p43, %p44
    %p46 = scmp.ne.s32.totalorder %s35, %s36
    %p47 = scmp.eq.s32.totalorder %s15, 0
    %p48 = por %p46, %p47
    %p49 = scmp.ne.s32.totalorder %s35, %s36
    %p50 = scmp.eq.s32.totalorder %s16, 3
    %p51 = por %p49, %p50
    %p53 = scmp.ne.s32.totalorder %s36, %s52
    %p54 = scmp.eq.s32.totalorder %s16, 0
    %p55 = por %p53, %p54
    %s57 = sadd.s32 %s56, 1
    %p60 = scmp.eq.s32.totalorder %s10, 3
    %p61 = scmp.ne.s32.totalorder %s56, %s58
    %p62 = scmp.eq.s32.totalorder %s10, 0
    %p63 = por %p61, %p62
    %p64 = scmp.ne.s32.totalorder %s56, %s58
    %p65 = scmp.eq.s32.totalorder %s15, 3
    %p66 = por %p64, %p65
    %p67 = scmp.ne.s32.totalorder %s58, %s59
    %p68 = scmp.eq.s32.totalorder %s15, 0
    %p69 = por %p67, %p68
    %p70 = scmp.ne.s32.totalorder %s58, %s59
    %p71 = scmp.eq.s32.totalorder %s16, 3
    %p72 = por %p70, %p71
    %p74 = scmp.ne.s32.totalorder %s59, %s73
    %p75 = scmp.eq.s32.totalorder %s16, 0
    %p76 = por %p74, %p75
    %s78 = sadd.s32 %s77, 1
    %p81 = scmp.eq.s32.totalorder %s10, 3
    %p82 = scmp.ne.s32.totalorder %s77, %s79
    %p83 = scmp.eq.s32.totalorder %s10, 0
    %p84 = por %p82, %p83
    %p85 = scmp.ne.s32.totalorder %s77, %s79
    %p86 = scmp.eq.s32.totalorder %s15, 3
    %p87 = por %p85, %p86
    %p88 = scmp.ne.s32.totalorder %s79, %s80
    %p89 = scmp.eq.s32.totalorder %s15, 0
    %p90 = por %p88, %p89
    %p91 = scmp.ne.s32.totalorder %s79, %s80
    %p92 = scmp.eq.s32.totalorder %s16, 3
    %p93 = por %p91, %p92
    %p95 = scmp.ne.s32.totalorder %s80, %s94
    %p96 = scmp.eq.s32.totalorder %s16, 0
    %p97 = por %p95, %p96
    %s99 = sadd.s32 %s98, 1
    %p102 = scmp.eq.s32.totalorder %s10, 3
    %p103 = scmp.ne.s32.totalorder %s98, %s100
    %p104 = scmp.eq.s32.totalorder %s10, 0
    %p105 = por %p103, %p104
    %p106 = scmp.ne.s32.totalorder %s98, %s100
    %p107 = scmp.eq.s32.totalorder %s15, 3
    %p108 = por %p106, %p107
    %p109 = scmp.ne.s32.totalorder %s100, %s101
    %p110 = scmp.eq.s32.totalorder %s15, 0
    %p111 = por %p109, %p110
    %p112 = scmp.ne.s32.totalorder %s100, %s101
    %p113 = scmp.eq.s32.totalorder %s16, 3
    %p114 = por %p112, %p113
    %p116 = scmp.ne.s32.totalorder %s101, %s115
    %p117 = scmp.eq.s32.totalorder %s16, 0
    %p118 = por %p116, %p117
    %s119 = ssub.s32 %s17, %s29
    %s120 = ssub.s32 %s18, %s25
    %s121 = sor.u32 %s119, %s120
    %p122 = scmp.eq.s32.totalorder %s121, 0
    %s124 = sadd.s32 %s123, 1
    %s125 = scalar_select %p122, %s123, %s124
    %p128 = pneg %p122
    %p129 = scmp.eq.s32.totalorder %s10, 3
    %p130 = por %p128, %p129
    %p131 = scmp.ne.s32.totalorder %s123, %s126
    %p132 = scmp.eq.s32.totalorder %s10, 0
    %p133 = por %p131, %p132
    %p134 = scmp.ne.s32.totalorder %s123, %s126
    %p135 = scmp.eq.s32.totalorder %s15, 3
    %p136 = por %p134, %p135
    %p137 = scmp.ne.s32.totalorder %s126, %s127
    %p138 = scmp.eq.s32.totalorder %s15, 0
    %p139 = por %p137, %p138
    %p140 = scmp.ne.s32.totalorder %s126, %s127
    %p141 = scmp.eq.s32.totalorder %s16, 3
    %p142 = por %p140, %p141
    %p144 = scmp.ne.s32.totalorder %s127, %s143
    %p145 = scmp.eq.s32.totalorder %s16, 0
    %p146 = por %p144, %p145
    %p147 = scmp.le.s32.totalorder 1, %s10
    %p148 = scmp.lt.s32.totalorder %s10, 5
    %p149 = pnand %p147, %p148
    %p150 = pneg %p149
    // Predicated region
    $region9: #{basic_conv2d.1} parent=5 // pred_check
      _
    $region10: #{basic_conv2d.1} parent=5 // pred_check_branch
      %152 = sbr.rel (%p149) target = $region12
    $region11: #{basic_conv2d.1} parent=5 // pred_region
      %s153 = ssub.s32 %s10, 1
      // Predicated region
      $region13: #{basic_conv2d.1} parent=11 // pred_check
        %p154 = pneg %p69
      $region14: #{basic_conv2d.1} parent=11 // pred_check_branch
        %156 = sbr.rel (%p154) target = $region16
      $region15: #{basic_conv2d.1} parent=11 // pred_region
        _
      $region16: #{basic_conv2d.1} parent=11 // pred_fallthru
        _
      // Predicated region
      $region17: #{basic_conv2d.1} parent=11 // pred_check
        %p157 = pneg %p90
      $region18: #{basic_conv2d.1} parent=11 // pred_check_branch
        %159 = sbr.rel (%p157) target = $region20
      $region19: #{basic_conv2d.1} parent=11 // pred_region
        _
      $region20: #{basic_conv2d.1} parent=11 // pred_fallthru
        _
      // Predicated region
      $region21: #{basic_conv2d.1} parent=11 // pred_check
        %p160 = pneg %p111
      $region22: #{basic_conv2d.1} parent=11 // pred_check_branch
        %162 = sbr.rel (%p160) target = $region24
      $region23: #{basic_conv2d.1} parent=11 // pred_region
        _
      $region24: #{basic_conv2d.1} parent=11 // pred_fallthru
        _
    $region12: #{basic_conv2d.1} parent=5 // pred_fallthru
      _
    %p163 = scmp.lt.s32.totalorder %s10, 4
    // Predicated region
    $region25: #{basic_conv2d.1} parent=5 // pred_check
      %p164 = pneg %p163
    $region26: #{basic_conv2d.1} parent=5 // pred_check_branch
      %166 = sbr.rel (%p164) target = $region28
    $region27: #{basic_conv2d.1} parent=5 // pred_region
      // Predicated region
      $region29: #{basic_conv2d.1} parent=27 // pred_check
        %p167 = pneg %p42
      $region30: #{basic_conv2d.1} parent=27 // pred_check_branch
        %169 = sbr.rel (%p167) target = $region32
      $region31: #{basic_conv2d.1} parent=27 // pred_region
        %p170 = scmp.lt.s32.totalorder %s17, 1
        %s171 = scalar_select %p170, %s17, 1
        %s172 = smul.addr %s171, 54
        %s173 = smul.addr %s172, 4
        %s174 = scalar_lea.vmem %s0, %s173
      $region32: #{basic_conv2d.1} parent=27 // pred_fallthru
        _
    $region28: #{basic_conv2d.1} parent=5 // pred_fallthru
      _
    %p175 = scmp.le.s32.totalorder 1, %s10
    %p176 = scmp.lt.s32.totalorder %s10, 5
    %p177 = pnand %p175, %p176
    %p178 = pneg %p177
    // Predicated region
    $region33: #{basic_conv2d.1} parent=5 // pred_check
      _
    $region34: #{basic_conv2d.1} parent=5 // pred_check_branch
      %180 = sbr.rel (%p177) target = $region36
    $region35: #{basic_conv2d.1} parent=5 // pred_region
      %s181 = ssub.s32 %s10, 1
      %p182 = scmp.lt.s32.totalorder %s19, 1
      %s183 = scalar_select %p182, %s19, 1
      %s184 = smul.addr %s183, 54
      %s185 = smul.addr %s184, 4
      %s186 = scalar_lea.vmem %s0, %s185
      %p187 = pneg %p48
      %p188 = pneg %p45
      %p189 = pneg %p69
      %p190 = pneg %p66
      %p191 = pneg %p90
      %p192 = pneg %p87
      %p193 = pneg %p111
      %p194 = pneg %p108
      %p195 = pneg %p139
      %p196 = pneg %p136
      %p197 = scmp.lt.s32.totalorder %s19, 1
      %s198 = scalar_select %p197, %s19, 1
      %p199 = scmp.lt.s32.totalorder %s20, 1
      %s200 = scalar_select %p199, %s20, 1
      %s201 = smul.addr %s198, 2
      %s202 = sadd.s32 %s200, %s201
      %s203 = smul.addr %s202, 8
      %s204 = scalar_lea.vmem %s4, %s203
      %p205 = scmp.lt.s32.totalorder %s19, 1
      %s206 = scalar_select %p205, %s19, 1
      %s207 = smul.addr %s206, 54
      %s208 = smul.addr %s207, 4
      %s209 = scalar_lea.vmem %s0, %s208
      %p210 = scmp.lt.s32.totalorder %s19, 1
      %s211 = scalar_select %p210, %s19, 1
      %p212 = scmp.lt.s32.totalorder %s20, 1
      %s213 = scalar_select %p212, %s20, 1
      %s214 = smul.addr %s211, 2
      %s215 = sadd.s32 %s213, %s214
      %s216 = smul.addr %s215, 8
      %s217 = scalar_lea.vmem %s4, %s216
      %s219 = smul.u32 %s20, 8
      %s220 = smul.u32 %s219, 3
      %s221 = smul.addr %s220, 4
      %s222 = scalar_lea.vmem %s209, %s221
      %v223 = vld [vmem:[%s222] sm:$0xf]
      %v224 = vld [vmem:[%s222 + $0x4] sm:$0xf]
      %v225 = vld [vmem:[%s222 + $0x8] sm:$0x1]
      %v226 = vld [vmem:[%s222 + $0xc] sm:$0xf]
      %v227 = vld [vmem:[%s222 + $0x10] sm:$0xf]
      %v228 = vld [vmem:[%s222 + $0x14] sm:$0x1]
      %v229 = vld [vmem:[%s222 + $0x18] sm:$0xf]
      %v230 = vld [vmem:[%s222 + $0x1c] sm:$0xf]
      %v231 = vld [vmem:[%s222 + $0x20] sm:$0x1]
      %v232 = vld [vmem:[%s222 + $0x24] sm:$0xf]
      %v233 = vld [vmem:[%s222 + $0x28] sm:$0xf]
      %v234 = vld [vmem:[%s222 + $0x2c] sm:$0x1]
      %v235 = vld [vmem:[%s222 + $0x30] sm:$0xf]
      %v236 = vld [vmem:[%s222 + $0x34] sm:$0xf]
      %v237 = vld [vmem:[%s222 + $0x38] sm:$0x1]
      %v238 = vld [vmem:[%s222 + $0x3c] sm:$0xf]
      %v239 = vld [vmem:[%s222 + $0x40] sm:$0xf]
      %v240 = vld [vmem:[%s222 + $0x44] sm:$0x1]
      %v241 = vld [vmem:[%s222 + $0x48] sm:$0xf]
      %v242 = vld [vmem:[%s222 + $0x4c] sm:$0xf]
      %v243 = vld [vmem:[%s222 + $0x50] sm:$0x1]
      %v244 = vld [vmem:[%s222 + $0x54] sm:$0xf]
      %v245 = vld [vmem:[%s222 + $0x58] sm:$0xf]
      %v246 = vld [vmem:[%s222 + $0x5c] sm:$0x1]
      %v247 = vld [vmem:[%s222 + $0x60] sm:$0xf]
      %v248 = vld [vmem:[%s222 + $0x64] sm:$0xf]
      %v249 = vld [vmem:[%s222 + $0x68] sm:$0x1]
      %v250 = vld [vmem:[%s222 + $0x6c] sm:$0xf]
      %v251 = vld [vmem:[%s222 + $0x70] sm:$0xf]
      %v252 = vld [vmem:[%s222 + $0x74] sm:$0x1]
      %v273 = vunpack.c.l.b16 %v223
      %v274 = vunpack.c.l.b16 %v224
      %v275 = vunpack.c.l.b16 %v226
      %v276 = vunpack.c.l.b16 %v227
      %v277 = vunpack.c.l.b16 %v229
      %v278 = vunpack.c.l.b16 %v230
      %v279 = vunpack.c.l.b16 %v232
      %v280 = vunpack.c.l.b16 %v233
      %v281 = vunpack.c.l.b16 %v235
      %v282 = vunpack.c.l.b16 %v236
      %v283 = vunpack.c.l.b16 %v238
      %v284 = vunpack.c.l.b16 %v239
      %v285 = vunpack.c.l.b16 %v241
      %v286 = vunpack.c.l.b16 %v242
      %v287 = vunpack.c.l.b16 %v244
      %v288 = vunpack.c.l.b16 %v245
      %v289 = vunpack.c.l.b16 %v247
      %v290 = vunpack.c.l.b16 %v248
      %v291 = vunpack.c.l.b16 %v250
      %v292 = vunpack.c.l.b16 %v251
      %v293 = vpack.c.b16 %v274, %v273
      %v294 = vpack.c.b16 %v276, %v275
      %v295 = vpack.c.b16 %v278, %v277
      %v296 = vpack.c.b16 %v280, %v279
      %v297 = vpack.c.b16 %v282, %v281
      %v298 = vpack.c.b16 %v284, %v283
      %v299 = vpack.c.b16 %v286, %v285
      %v300 = vpack.c.b16 %v288, %v287
      %v301 = vpack.c.b16 %v290, %v289
      %v302 = vpack.c.b16 %v292, %v291
      %v313 = vunpack.c.l.b16 %v225
      %v314 = vunpack.c.l.b16 %v228
      %v315 = vunpack.c.l.b16 %v231
      %v316 = vunpack.c.l.b16 %v234
      %v317 = vunpack.c.l.b16 %v237
      %v318 = vunpack.c.l.b16 %v240
      %v319 = vunpack.c.l.b16 %v243
      %v320 = vunpack.c.l.b16 %v246
      %v321 = vunpack.c.l.b16 %v249
      %v322 = vunpack.c.l.b16 %v252
      %v323 = vpack.c.b16 %v313, %v313
      %v324 = vpack.c.b16 %v314, %v314
      %v325 = vpack.c.b16 %v315, %v315
      %v326 = vpack.c.b16 %v316, %v316
      %v327 = vpack.c.b16 %v317, %v317
      %v328 = vpack.c.b16 %v318, %v318
      %v329 = vpack.c.b16 %v319, %v319
      %v330 = vpack.c.b16 %v320, %v320
      %v331 = vpack.c.b16 %v321, %v321
      %v332 = vpack.c.b16 %v322, %v322
      %vm333 = vsmask.f32 7424
      %v335 = vshrl.u32 %v293, 16
      %v337 = vshll.u32 %v293, 16
      %v339 = vrot.slane %v337, 1
      %v340 = vor.u32 %v335, %v339
      %v342 = vshll.u32 %v323, 16
      %v344 = vrot.slane %v342, 1
      %v345 = vsel %vm333, %v340, %v344
      %v347 = vshrl.u32 %v294, 16
      %v349 = vshll.u32 %v294, 16
      %v351 = vrot.slane %v349, 1
      %v352 = vor.u32 %v347, %v351
      %v354 = vshll.u32 %v324, 16
      %v356 = vrot.slane %v354, 1
      %v357 = vsel %vm333, %v352, %v356
      %v359 = vshrl.u32 %v295, 16
      %v361 = vshll.u32 %v295, 16
      %v363 = vrot.slane %v361, 1
      %v364 = vor.u32 %v359, %v363
      %v366 = vshll.u32 %v325, 16
      %v368 = vrot.slane %v366, 1
      %v369 = vsel %vm333, %v364, %v368
      %v371 = vshrl.u32 %v296, 16
      %v373 = vshll.u32 %v296, 16
      %v375 = vrot.slane %v373, 1
      %v376 = vor.u32 %v371, %v375
      %v378 = vshll.u32 %v326, 16
      %v380 = vrot.slane %v378, 1
      %v381 = vsel %vm333, %v376, %v380
      %v383 = vshrl.u32 %v297, 16
      %v385 = vshll.u32 %v297, 16
      %v387 = vrot.slane %v385, 1
      %v388 = vor.u32 %v383, %v387
      %v390 = vshll.u32 %v327, 16
      %v392 = vrot.slane %v390, 1
      %v393 = vsel %vm333, %v388, %v392
      %v395 = vshrl.u32 %v298, 16
      %v397 = vshll.u32 %v298, 16
      %v399 = vrot.slane %v397, 1
      %v400 = vor.u32 %v395, %v399
      %v402 = vshll.u32 %v328, 16
      %v404 = vrot.slane %v402, 1
      %v405 = vsel %vm333, %v400, %v404
      %v407 = vshrl.u32 %v299, 16
      %v409 = vshll.u32 %v299, 16
      %v411 = vrot.slane %v409, 1
      %v412 = vor.u32 %v407, %v411
      %v414 = vshll.u32 %v329, 16
      %v416 = vrot.slane %v414, 1
      %v417 = vsel %vm333, %v412, %v416
      %v419 = vshrl.u32 %v300, 16
      %v421 = vshll.u32 %v300, 16
      %v423 = vrot.slane %v421, 1
      %v424 = vor.u32 %v419, %v423
      %v426 = vshll.u32 %v330, 16
      %v428 = vrot.slane %v426, 1
      %v429 = vsel %vm333, %v424, %v428
      %v431 = vshrl.u32 %v301, 16
      %v433 = vshll.u32 %v301, 16
      %v435 = vrot.slane %v433, 1
      %v436 = vor.u32 %v431, %v435
      %v438 = vshll.u32 %v331, 16
      %v440 = vrot.slane %v438, 1
      %v441 = vsel %vm333, %v436, %v440
      %v443 = vshrl.u32 %v302, 16
      %v445 = vshll.u32 %v302, 16
      %v447 = vrot.slane %v445, 1
      %v448 = vor.u32 %v443, %v447
      %v450 = vshll.u32 %v332, 16
      %v452 = vrot.slane %v450, 1
      %v453 = vsel %vm333, %v448, %v452
      %454 = vrot.lane.b32.xlu0 %v345, 4
      %v455 = vpop.permute.xlu0 %454
      %456 = vrot.lane.b32.xlu0 %v357, 4
      %v457 = vpop.permute.xlu0 %456
      %458 = vrot.lane.b32.xlu0 %v369, 4
      %v459 = vpop.permute.xlu0 %458
      %460 = vrot.lane.b32.xlu0 %v381, 4
      %v461 = vpop.permute.xlu0 %460
      %462 = vrot.lane.b32.xlu0 %v393, 4
      %v463 = vpop.permute.xlu0 %462
      %464 = vrot.lane.b32.xlu0 %v405, 4
      %v465 = vpop.permute.xlu0 %464
      %466 = vrot.lane.b32.xlu0 %v417, 4
      %v467 = vpop.permute.xlu0 %466
      %468 = vrot.lane.b32.xlu0 %v429, 4
      %v469 = vpop.permute.xlu0 %468
      %470 = vrot.lane.b32.xlu0 %v441, 4
      %v471 = vpop.permute.xlu0 %470
      %472 = vrot.lane.b32.xlu0 %v453, 4
      %v473 = vpop.permute.xlu0 %472
      %vm474 = vcmask 1046528
      %v475 = vrot.slane %v293, 1
      %v476 = vrot.slane %v323, 1
      %v477 = vsel %vm474, %v475, %v476
      %v478 = vrot.slane %v294, 1
      %v479 = vrot.slane %v324, 1
      %v480 = vsel %vm474, %v478, %v479
      %v481 = vrot.slane %v295, 1
      %v482 = vrot.slane %v325, 1
      %v483 = vsel %vm474, %v481, %v482
      %v484 = vrot.slane %v296, 1
      %v485 = vrot.slane %v326, 1
      %v486 = vsel %vm474, %v484, %v485
      %v487 = vrot.slane %v297, 1
      %v488 = vrot.slane %v327, 1
      %v489 = vsel %vm474, %v487, %v488
      %v490 = vrot.slane %v298, 1
      %v491 = vrot.slane %v328, 1
      %v492 = vsel %vm474, %v490, %v491
      %v493 = vrot.slane %v299, 1
      %v494 = vrot.slane %v329, 1
      %v495 = vsel %vm474, %v493, %v494
      %v496 = vrot.slane %v300, 1
      %v497 = vrot.slane %v330, 1
      %v498 = vsel %vm474, %v496, %v497
      %v499 = vrot.slane %v301, 1
      %v500 = vrot.slane %v331, 1
      %v501 = vsel %vm474, %v499, %v500
      %v502 = vrot.slane %v302, 1
      %v503 = vrot.slane %v332, 1
      %v504 = vsel %vm474, %v502, %v503
      %505 = vrot.lane.b32.xlu0 %v477, 8
      %v506 = vpop.permute.xlu0 %505
      %507 = vrot.lane.b32.xlu0 %v480, 8
      %v508 = vpop.permute.xlu0 %507
      %509 = vrot.lane.b32.xlu0 %v483, 8
      %v510 = vpop.permute.xlu0 %509
      %511 = vrot.lane.b32.xlu0 %v486, 8
      %v512 = vpop.permute.xlu0 %511
      %513 = vrot.lane.b32.xlu0 %v489, 8
      %v514 = vpop.permute.xlu0 %513
      %515 = vrot.lane.b32.xlu0 %v492, 8
      %v516 = vpop.permute.xlu0 %515
      %517 = vrot.lane.b32.xlu0 %v495, 8
      %v518 = vpop.permute.xlu0 %517
      %519 = vrot.lane.b32.xlu0 %v498, 8
      %v520 = vpop.permute.xlu0 %519
      %521 = vrot.lane.b32.xlu0 %v501, 8
      %v522 = vpop.permute.xlu0 %521
      %523 = vrot.lane.b32.xlu0 %v504, 8
      %v524 = vpop.permute.xlu0 %523
      %vm525 = vcmask 31744
      %v527 = vsel %vm525, %v293, %v455
      %v529 = vsel %vm525, %v294, %v457
      %v531 = vsel %vm525, %v295, %v459
      %v533 = vsel %vm525, %v296, %v461
      %v535 = vsel %vm525, %v297, %v463
      %v537 = vsel %vm525, %v298, %v465
      %v539 = vsel %vm525, %v299, %v467
      %v541 = vsel %vm525, %v300, %v469
      %v543 = vsel %vm525, %v301, %v471
      %v545 = vsel %vm525, %v302, %v473
      %vm546 = vcmask 64512
      %v548 = vsel %vm546, %v527, %v506
      %v550 = vsel %vm546, %v529, %v508
      %v552 = vsel %vm546, %v531, %v510
      %v554 = vsel %vm546, %v533, %v512
      %v556 = vsel %vm546, %v535, %v514
      %v558 = vsel %vm546, %v537, %v516
      %v560 = vsel %vm546, %v539, %v518
      %v562 = vsel %vm546, %v541, %v520
      %v564 = vsel %vm546, %v543, %v522
      %v566 = vsel %vm546, %v545, %v524
      %575 = vrot.lane.b32.xlu0 %v550, 12
      %v576 = vpop.permute.xlu0 %575
      %577 = vrot.lane.b32.xlu0 %v552, 12
      %v578 = vpop.permute.xlu0 %577
      %579 = vrot.lane.b32.xlu0 %v554, 12
      %v580 = vpop.permute.xlu0 %579
      %581 = vrot.lane.b32.xlu0 %v556, 12
      %v582 = vpop.permute.xlu0 %581
      %583 = vrot.lane.b32.xlu0 %v558, 12
      %v584 = vpop.permute.xlu0 %583
      %585 = vrot.lane.b32.xlu0 %v560, 12
      %v586 = vpop.permute.xlu0 %585
      %587 = vrot.lane.b32.xlu0 %v562, 12
      %v588 = vpop.permute.xlu0 %587
      %589 = vrot.lane.b32.xlu0 %v564, 12
      %v590 = vpop.permute.xlu0 %589
      %592 = vrot.lane.b32.xlu0 %v552, 24
      %v593 = vpop.permute.xlu0 %592
      %594 = vrot.lane.b32.xlu0 %v554, 24
      %v595 = vpop.permute.xlu0 %594
      %596 = vrot.lane.b32.xlu0 %v556, 24
      %v597 = vpop.permute.xlu0 %596
      %598 = vrot.lane.b32.xlu0 %v558, 24
      %v599 = vpop.permute.xlu0 %598
      %600 = vrot.lane.b32.xlu0 %v560, 24
      %v601 = vpop.permute.xlu0 %600
      %602 = vrot.lane.b32.xlu0 %v562, 24
      %v603 = vpop.permute.xlu0 %602
      %604 = vrot.lane.b32.xlu0 %v564, 24
      %v605 = vpop.permute.xlu0 %604
      %606 = vrot.lane.b32.xlu0 %v566, 24
      %v607 = vpop.permute.xlu0 %606
      %vm608 = vcmask 97280
      %v610 = vsel %vm608, %v548, %v576
      %v612 = vsel %vm608, %v550, %v578
      %v614 = vsel %vm608, %v552, %v580
      %v616 = vsel %vm608, %v554, %v582
      %v618 = vsel %vm608, %v556, %v584
      %v620 = vsel %vm608, %v558, %v586
      %v622 = vsel %vm608, %v560, %v588
      %v624 = vsel %vm608, %v562, %v590
      %vm625 = vcmask 195584
      %v627 = vsel %vm625, %v610, %v593
      %v629 = vsel %vm625, %v612, %v595
      %v631 = vsel %vm625, %v614, %v597
      %v633 = vsel %vm625, %v616, %v599
      %v635 = vsel %vm625, %v618, %v601
      %v637 = vsel %vm625, %v620, %v603
      %v639 = vsel %vm625, %v622, %v605
      %v641 = vsel %vm625, %v624, %v607
      %v642 = vld [vmem:[%s1] sm:$0xf]
      %vm643 = vcmask 293888
      %v645 = vsel %vm643, %v642, 0
      %v647 = vsel %vm643, %v627, 0
      %v649 = vsel %vm643, %v629, 0
      %v651 = vsel %vm643, %v631, 0
      %v653 = vsel %vm643, %v633, 0
      %v655 = vsel %vm643, %v635, 0
      %v657 = vsel %vm643, %v637, 0
      %v659 = vsel %vm643, %v639, 0
      %v661 = vsel %vm643, %v641, 0
      %663 = vmatprep.subr.bf16.mxu0 0
      %664 = vmatpush1.bf16.xpose.msra.mxu0 %v647
      %665 = vmatprep.subr.bf16.mxu0 0
      %666 = vmatpush1.bf16.xpose.msra.mxu0 %v649
      %667 = vmatprep.subr.bf16.mxu0 0
      %668 = vmatpush1.bf16.xpose.msra.mxu0 %v651
      %669 = vmatprep.subr.bf16.mxu0 0
      %670 = vmatpush1.bf16.xpose.msra.mxu0 %v653
      %671 = vmatprep.subr.bf16.mxu0 0
      %672 = vmatpush1.bf16.xpose.msra.mxu0 %v655
      %673 = vmatprep.subr.bf16.mxu0 0
      %674 = vmatpush1.bf16.xpose.msra.mxu0 %v657
      %675 = vmatprep.subr.bf16.mxu0 0
      %676 = vmatpush1.bf16.xpose.msra.mxu0 %v659
      %677 = vmatprep.subr.bf16.mxu0 0
      %678 = vmatpush1.bf16.xpose.msra.mxu0 %v661
      %679 = vmatprep.subr.bf16.mxu0 0
      %680 = vmatpush1.bf16.xpose.msra.mxu0 0
      %681 = vmatprep.subr.bf16.mxu0 0
      %682 = vmatpush1.bf16.xpose.msra.mxu0 0
      %683 = vmatprep.subr.bf16.mxu0 0
      %684 = vmatpush1.bf16.xpose.msra.mxu0 0
      %685 = vmatprep.subr.bf16.mxu0 0
      %686 = vmatpush1.bf16.xpose.msra.mxu0 0
      %687 = vmatprep.subr.bf16.mxu0 0
      %688 = vmatpush1.bf16.xpose.msra.mxu0 0
      %689 = vmatprep.subr.bf16.mxu0 0
      %690 = vmatpush1.bf16.xpose.msra.mxu0 0
      %691 = vmatprep.subr.bf16.mxu0 0
      %692 = vmatpush1.bf16.xpose.msra.mxu0 0
      %693 = vmatprep.subr.bf16.mxu0 0
      %694 = vmatpush1.bf16.xpose.msra.mxu0 0
      %695 = vmatprep.mubr.bf16.mxu0 0
      %696 = vmatmul.mubr.bf16.gmra.mrb[0].mxu0 %v645
      %v697 = vpop.f32.mrb[0].mxu0
      %v698 = vadd.f32 0.0, %v697
      %v699 = vpop.f32.mrb[0].mxu0
      %v700 = vpop.f32.mrb[0].mxu0
      %v701 = vpop.f32.mrb[0].mxu0
      %702 = vdwg.mxu0
      %v703 = vld [vmem:[%s2] sm:$0xff]
      %705 = vset.pattern.permute.xlu0 0
      %706 = vperm.xlu0 %705, %v703
      %v707 = vpop.permute.xlu0 %706
      %v709 = vmul.f32 %v698, %v707
      %v710 = vld [vmem:[%s3] sm:$0xff]
      %712 = vset.pattern.permute.xlu0 0
      %713 = vperm.xlu0 %712, %v710
      %v714 = vpop.permute.xlu0 %713
      %v716 = vadd.f32 %v709, %v714
      %v717 = vmax.f32 %v716, 0.0
      %718 = vst [vmem:[%s217] sm:$0xff] %v717
      %p719 = scmp.lt.s32.totalorder %s19, 1
      %s720 = scalar_select %p719, %s19, 1
      %p721 = scmp.lt.s32.totalorder %s20, 1
      %s722 = scalar_select %p721, %s20, 1
      %s723 = smul.addr %s720, 2
      %s724 = sadd.s32 %s722, %s723
      %s725 = smul.addr %s724, 8
      %s726 = scalar_lea.vmem %s4, %s725
      // Predicated region
      $region37: #{basic_conv2d.1} parent=35 // pred_check
        %p727 = pneg %p136
      $region38: #{basic_conv2d.1} parent=35 // pred_check_branch
        %729 = sbr.rel (%p727) target = $region40
      $region39: #{basic_conv2d.1} parent=35 // pred_region
        _
      $region40: #{basic_conv2d.1} parent=35 // pred_fallthru
        _
    $region36: #{basic_conv2d.1} parent=5 // pred_fallthru
      _
    %p730 = scmp.le.s32.totalorder 2, %s10
    // Predicated region
    $region41: #{basic_conv2d.1} parent=5 // pred_check
      %p731 = pneg %p730
    $region42: #{basic_conv2d.1} parent=5 // pred_check_branch
      %733 = sbr.rel (%p731) target = $region44
    $region43: #{basic_conv2d.1} parent=5 // pred_region
      %s734 = ssub.s32 %s10, 2
      // Predicated region
      $region45: #{basic_conv2d.1} parent=43 // pred_check
        %p735 = pneg %p142
      $region46: #{basic_conv2d.1} parent=43 // pred_check_branch
        %737 = sbr.rel (%p735) target = $region48
      $region47: #{basic_conv2d.1} parent=43 // pred_region
        %p738 = scmp.lt.s32.totalorder %s21, 1
        %s739 = scalar_select %p738, %s21, 1
        %p740 = scmp.lt.s32.totalorder %s22, 1
        %s741 = scalar_select %p740, %s22, 1
        %s742 = smul.addr %s739, 2
        %s743 = sadd.s32 %s741, %s742
        %s744 = smul.addr %s743, 8
        %s745 = scalar_lea.vmem %s4, %s744
      $region48: #{basic_conv2d.1} parent=43 // pred_fallthru
        _
    $region44: #{basic_conv2d.1} parent=5 // pred_fallthru
      _
  $region6: #{basic_conv2d.1} parent=0 // loop_footer
    %s14 = sadd.s32 1, %s10
  $region7: #{basic_conv2d.1} parent=0 // loop_footer_branch
    %9 = sbr.rel target = $region3
  $region8: #{basic_conv2d.1} parent=0 // loop_exit
    _

</llo_original>
